<compile_context>
chip_gen: v6e
topology: v6e:2x2x1
jax: 0.10.0
libtpu: 0.0.40
codegen_flags: <defaults>
</compile_context>

<pallas_src>
import functools

import jax
import jax.numpy as jnp
from jax.experimental import pallas as pl
from jax.experimental.pallas import tpu as pltpu


def _round_up(v, m):
    return (v + m - 1) // m * m


def _sublane_tile(itemsize):
    return {4: 8, 2: 16, 1: 32}[itemsize]


def _blk_bytes(sub, lane, itemsize):
    """VMEM bytes of a (sub, lane) block including (sublane, 128) padding."""
    return _round_up(sub, _sublane_tile(itemsize)) * _round_up(lane, 128) * itemsize


def _vmem_capacity_bytes():
    try:
        info = pltpu.get_tpu_info()
        cap = getattr(info, "vmem_capacity_bytes", None)
        if cap:
            return int(cap)
    except Exception:
        pass
    return 64 << 20  # conservative fallback (v7x per-TC VMEM)


def _global_model_kernel(nb_ref, x_ref, eb_ref, e_ref, u_ref,
                         w1u_ref, w1n_ref, w1e_ref, b1_ref, g_ref, beta_ref,
                         w2_ref, b2_ref,
                         o_ref, nacc_ref, eacc_ref, ncnt_ref, ecnt_ref,
                         *, agg_dtype):
    t = pl.program_id(0)
    Bp = o_ref.shape[0]
    cn = x_ref.shape[1]          # x_ref is feature-major: [n_outc, cn]
    ce = e_ref.shape[1]          # e_ref is feature-major: [e_outc, ce]

    @pl.when(t == 0)
    def _init():
        nacc_ref[...] = jnp.zeros_like(nacc_ref)
        eacc_ref[...] = jnp.zeros_like(eacc_ref)
        ncnt_ref[...] = jnp.zeros_like(ncnt_ref)
        ecnt_ref[...] = jnp.zeros_like(ecnt_ref)

    # Contract the shared lane (chunk) axis of the one-hot and the feature
    # block (A @ B^T on the MXU, same structure as q @ k^T in attention).
    dn = (((1,), (1,)), ((), ()))

    # Padded columns carry a sentinel batch id == Bp (never matches iota
    # 0..Bp-1) so they contribute nothing to sums or counts.
    node_match = (jax.lax.broadcasted_iota(jnp.int32, (Bp, cn), 0)
                  == nb_ref[...])                                   # [Bp, cn]
    node_oh = node_match.astype(agg_dtype)
    nacc_ref[...] += jax.lax.dot_general(
        node_oh, x_ref[...].astype(agg_dtype), dn,
        preferred_element_type=jnp.float32)                         # [Bp, n_outc]
    ncnt_ref[...] += jnp.sum(node_match.astype(jnp.float32),
                             axis=1, keepdims=True)                 # [Bp, 1]

    edge_match = (jax.lax.broadcasted_iota(jnp.int32, (Bp, ce), 0)
                  == eb_ref[...])                                   # [Bp, ce]
    edge_oh = edge_match.astype(agg_dtype)
    eacc_ref[...] += jax.lax.dot_general(
        edge_oh, e_ref[...].astype(agg_dtype), dn,
        preferred_element_type=jnp.float32)                         # [Bp, e_outc]
    ecnt_ref[...] += jnp.sum(edge_match.astype(jnp.float32),
                             axis=1, keepdims=True)                 # [Bp, 1]

    # ---- finalize: mean-normalize + MLP (Linear->LayerNorm->ReLU->Linear) --
    @pl.when(t == pl.num_programs(0) - 1)
    def _finalize():
        node_mean = nacc_ref[...] / jnp.maximum(ncnt_ref[...], 1.0)
        edge_mean = eacc_ref[...] / jnp.maximum(ecnt_ref[...], 1.0)

        # concat-free first Linear: split-weight sum of three small dots.
        h = (jnp.dot(u_ref[...], w1u_ref[...],
                     preferred_element_type=jnp.float32)
             + jnp.dot(node_mean, w1n_ref[...],
                       preferred_element_type=jnp.float32)
             + jnp.dot(edge_mean, w1e_ref[...],
                       preferred_element_type=jnp.float32)
             + b1_ref[...])

        mu = jnp.mean(h, axis=-1, keepdims=True)
        var = jnp.mean((h - mu) * (h - mu), axis=-1, keepdims=True)
        hn = (h - mu) * jax.lax.rsqrt(var + 1e-5)
        hn = hn * g_ref[...] + beta_ref[...]
        hr = jnp.maximum(hn, 0.0)

        y = jnp.dot(hr, w2_ref[...], preferred_element_type=jnp.float32) + b2_ref[...]
        o_ref[...] = y.astype(o_ref.dtype)


@functools.partial(jax.jit, static_argnames=("max_chunk", "agg_dtype"))
def global_model_forward(x, edge_index, edge_attr, u, batch, params,
                         *, max_chunk=32768, agg_dtype=jnp.float32):
    """Pallas-backed forward of GlobalModel.

    max_chunk: upper bound on rows (nodes/edges) per grid step; it is clamped
               against the device VMEM budget derived at trace time.
    agg_dtype: dtype of the streamed features / one-hot matmul operands.
               jnp.bfloat16 halves feature DMA bytes (best payoff on v5e) but
               rounds the feature operands; f32 matches the reference tightly.
    """
    N, n_outc = x.shape
    E, e_outc = edge_attr.shape
    B, u_inc = u.shape
    hs1 = params["w1"].shape[1]
    u_outc = params["w2"].shape[1]
    f32 = jnp.float32
    feat_dtype = jnp.dtype(agg_dtype)
    fsz = feat_dtype.itemsize

    # ---- glue: edge -> batch index plumbing (stays in XLA) ----------------
    row = edge_index[0]
    edge_batch = batch[row]

    # ---- shape padding: sublane-aligned B, lane-dense output --------------
    Bp = _round_up(B, 8)
    out_pad = _round_up(u_outc, 128)

    # ---- generation-aware VMEM budget and chunk sizing ---------------------
    vmem_cap = _vmem_capacity_bytes()
    usable = max(min(vmem_cap - (8 << 20), 100 << 20), 16 << 20)

    # fixed (chunk-independent) VMEM: params + output (double-buffered) + scratch
    fixed = 2 * (_blk_bytes(Bp, u_inc, 4)
                 + _blk_bytes(u_inc, hs1, 4) + _blk_bytes(n_outc, hs1, 4)
                 + _blk_bytes(e_outc, hs1, 4) + 3 * _blk_bytes(1, hs1, 4)
                 + _blk_bytes(hs1, out_pad, 4) + _blk_bytes(1, out_pad, 4)
                 + _blk_bytes(Bp, out_pad, 4)) \
            + _blk_bytes(Bp, n_outc, 4) + _blk_bytes(Bp, e_outc, 4) \
            + 2 * _blk_bytes(Bp, 1, 4)

    # streaming VMEM per 128 lanes of chunk (double-buffered blocks + one-hot
    # temporaries), for node and edge streams respectively.
    node_128 = 2 * (_blk_bytes(n_outc, 128, fsz) + _blk_bytes(1, 128, 4)) \
               + 3 * _blk_bytes(Bp, 128, 4)
    edge_128 = 2 * (_blk_bytes(e_outc, 128, fsz) + _blk_bytes(1, 128, 4)) \
               + 3 * _blk_bytes(Bp, 128, 4)
    per_row = (node_128 + edge_128) // 128

    chunk_cap = max(((usable - fixed - (4 << 20)) // max(per_row, 1)) // 128 * 128, 128)
    chunk = max(min(max_chunk // 128 * 128, chunk_cap), 128)

    T = max(pl.cdiv(N, chunk), pl.cdiv(E, chunk), 1)
    cn = _round_up(pl.cdiv(N, T), 128)
    ce = _round_up(pl.cdiv(E, T), 128)
    Np, Ep = cn * T, ce * T

    # ---- feature-major (lane-dense) streamed inputs ------------------------
    # One relayout pass here; the kernel then streams the dense payload.
    xT_p = jnp.zeros((n_outc, Np), feat_dtype).at[:, :N].set(
        x.astype(feat_dtype).T)
    eT_p = jnp.zeros((e_outc, Ep), feat_dtype).at[:, :E].set(
        edge_attr.astype(feat_dtype).T)
    nb_p = jnp.full((1, Np), Bp, jnp.int32).at[0, :N].set(batch.astype(jnp.int32))
    eb_p = jnp.full((1, Ep), Bp, jnp.int32).at[0, :E].set(edge_batch.astype(jnp.int32))
    u_p = jnp.zeros((Bp, u_inc), f32).at[:B].set(u.astype(f32))

    w1 = params["w1"].astype(f32)
    w1_u = w1[:u_inc]
    w1_n = w1[u_inc:u_inc + n_outc]
    w1_e = w1[u_inc + n_outc:]
    b1 = params["b1"].astype(f32).reshape(1, hs1)
    gamma = params["gamma"].astype(f32).reshape(1, hs1)
    beta = params["beta"].astype(f32).reshape(1, hs1)
    w2_p = jnp.zeros((hs1, out_pad), f32).at[:, :u_outc].set(params["w2"].astype(f32))
    b2_p = jnp.zeros((1, out_pad), f32).at[0, :u_outc].set(params["b2"].astype(f32))

    # ---- explicit VMEM limit from the real block sizes ---------------------
    per_step = 2 * (_blk_bytes(n_outc, cn, fsz) + _blk_bytes(1, cn, 4)
                    + _blk_bytes(e_outc, ce, fsz) + _blk_bytes(1, ce, 4))
    temps = 3 * (_blk_bytes(Bp, cn, 4) + _blk_bytes(Bp, ce, 4))
    vmem_limit = int(min(max(per_step + temps + fixed + (4 << 20), 16 << 20), usable))

    node_spec = pl.BlockSpec((n_outc, cn), lambda t: (0, t))
    edge_spec = pl.BlockSpec((e_outc, ce), lambda t: (0, t))
    nb_spec = pl.BlockSpec((1, cn), lambda t: (0, t))
    eb_spec = pl.BlockSpec((1, ce), lambda t: (0, t))
    full_spec = lambda a: pl.BlockSpec(a.shape, lambda t: (0,) * a.ndim)

    kernel = functools.partial(_global_model_kernel, agg_dtype=agg_dtype)

    out = pl.pallas_call(
        kernel,
        out_shape=jax.ShapeDtypeStruct((Bp, out_pad), jnp.float32),
        grid_spec=pltpu.PrefetchScalarGridSpec(
            num_scalar_prefetch=0,
            grid=(T,),
            in_specs=[nb_spec, node_spec, eb_spec, edge_spec,
                      full_spec(u_p),
                      full_spec(w1_u), full_spec(w1_n), full_spec(w1_e),
                      full_spec(b1), full_spec(gamma), full_spec(beta),
                      full_spec(w2_p), full_spec(b2_p)],
            out_specs=pl.BlockSpec((Bp, out_pad), lambda t: (0, 0)),
            scratch_shapes=[pltpu.VMEM((Bp, n_outc), jnp.float32),
                            pltpu.VMEM((Bp, e_outc), jnp.float32),
                            pltpu.VMEM((Bp, 1), jnp.float32),
                            pltpu.VMEM((Bp, 1), jnp.float32)]),
        compiler_params=pltpu.CompilerParams(
            dimension_semantics=("arbitrary",),
            vmem_limit_bytes=vmem_limit),
    )(nb_p, xT_p, eb_p, eT_p, u_p, w1_u, w1_n, w1_e,
      b1, gamma, beta, w2_p, b2_p)

    return out[:B, :u_outc]


def _reference_forward(x, edge_index, edge_attr, u, batch, params):
    """Pure-JAX reference for sanity checking."""
    B = u.shape[0]
    row = edge_index[0]
    edge_batch = batch[row]

    def scatter_mean(vals, idx, nseg):
        s = jax.ops.segment_sum(vals, idx, num_segments=nseg)
        c = jax.ops.segment_sum(jnp.ones((vals.shape[0],), vals.dtype), idx,
                                num_segments=nseg)
        return s / jnp.maximum(c, 1.0)[:, None]

    node_mean = scatter_mean(x, batch, B)
    edge_mean = scatter_mean(edge_attr, edge_batch, B)
    cat = jnp.concatenate([u, node_mean, edge_mean], axis=1)
    h = cat @ params["w1"] + params["b1"]
    mu = h.mean(-1, keepdims=True)
    var = ((h - mu) ** 2).mean(-1, keepdims=True)
    h = (h - mu) / jnp.sqrt(var + 1e-5) * params["gamma"] + params["beta"]
    h = jnp.maximum(h, 0.0)
    return h @ params["w2"] + params["b2"]


if __name__ == "__main__":
    # Config (small synthetic sizes implied by forward()):
    #   u_inc=8, n_outc=8, e_outc=8 -> inc=24 ; hs1=32 ; u_outc=8
    B, N, E = 2, 16, 24
    u_inc, n_outc, e_outc = 8, 8, 8
    inc = u_inc + n_outc + e_outc
    hs1, u_outc = 32, 8

    key = jax.random.PRNGKey(0)
    ks = jax.random.split(key, 10)

    x = jax.random.normal(ks[0], (N, n_outc), jnp.float32)
    edge_attr = jax.random.normal(ks[1], (E, e_outc), jnp.float32)
    u = jax.random.normal(ks[2], (B, u_inc), jnp.float32)
    batch = jnp.sort(jax.random.randint(ks[3], (N,), 0, B, jnp.int32))
    edge_index = jax.random.randint(ks[4], (2, E), 0, N, jnp.int32)

    params = {
        "w1": jax.random.normal(ks[5], (inc, hs1), jnp.float32) * 0.1,
        "b1": jax.random.normal(ks[6], (hs1,), jnp.float32) * 0.1,
        "gamma": jnp.ones((hs1,), jnp.float32),
        "beta": jnp.zeros((hs1,), jnp.float32),
        "w2": jax.random.normal(ks[7], (hs1, u_outc), jnp.float32) * 0.1,
        "b2": jax.random.normal(ks[8], (u_outc,), jnp.float32) * 0.1,
    }

    out = global_model_forward(x, edge_index, edge_attr, u, batch, params)
    out = jax.block_until_ready(out)

    ref = _reference_forward(x, edge_index, edge_attr, u, batch, params)
    assert out.shape == (B, u_outc)
    assert jnp.allclose(out, ref, atol=1e-4, rtol=1e-4)

    print("KERNEL_OK")
</pallas_src>

<mosaic_0001>
module attributes {stable_mosaic.version = 11 : i64} {
  func.func @_global_model_kernel(%arg0: i32, %arg1: memref<1x128xi32, #tpu.memory_space<vmem>>, %arg2: memref<8x128xf32, #tpu.memory_space<vmem>>, %arg3: memref<1x128xi32, #tpu.memory_space<vmem>>, %arg4: memref<8x128xf32, #tpu.memory_space<vmem>>, %arg5: memref<8x8xf32, #tpu.memory_space<vmem>>, %arg6: memref<8x32xf32, #tpu.memory_space<vmem>>, %arg7: memref<8x32xf32, #tpu.memory_space<vmem>>, %arg8: memref<8x32xf32, #tpu.memory_space<vmem>>, %arg9: memref<1x32xf32, #tpu.memory_space<vmem>>, %arg10: memref<1x32xf32, #tpu.memory_space<vmem>>, %arg11: memref<1x32xf32, #tpu.memory_space<vmem>>, %arg12: memref<32x128xf32, #tpu.memory_space<vmem>>, %arg13: memref<1x128xf32, #tpu.memory_space<vmem>>, %arg14: memref<8x128xf32, #tpu.memory_space<vmem>>, %arg15: memref<8x8xf32, #tpu.memory_space<vmem>>, %arg16: memref<8x8xf32, #tpu.memory_space<vmem>>, %arg17: memref<8x1xf32, #tpu.memory_space<vmem>>, %arg18: memref<8x1xf32, #tpu.memory_space<vmem>>) attributes {dimension_semantics = [#tpu.dimension_semantics<arbitrary>], iteration_bounds = array<i64: 1>, scalar_prefetch = 0 : i64, scratch_operands = 4 : i64, tpu.core_type = #tpu.core_type<tc>, window_params = [{transform_indices = @transform_0, window_bounds = array<i64: 1, 128>}, {transform_indices = @transform_1, window_bounds = array<i64: 8, 128>}, {transform_indices = @transform_2, window_bounds = array<i64: 1, 128>}, {transform_indices = @transform_3, window_bounds = array<i64: 8, 128>}, {pipeline_mode = #tpu.pipeline_mode<synchronous>, transform_indices = @transform_4, window_bounds = array<i64: 8, 8>}, {pipeline_mode = #tpu.pipeline_mode<synchronous>, transform_indices = @transform_5, window_bounds = array<i64: 8, 32>}, {pipeline_mode = #tpu.pipeline_mode<synchronous>, transform_indices = @transform_6, window_bounds = array<i64: 8, 32>}, {pipeline_mode = #tpu.pipeline_mode<synchronous>, transform_indices = @transform_7, window_bounds = array<i64: 8, 32>}, {pipeline_mode = #tpu.pipeline_mode<synchronous>, transform_indices = @transform_8, window_bounds = array<i64: 1, 32>}, {pipeline_mode = #tpu.pipeline_mode<synchronous>, transform_indices = @transform_9, window_bounds = array<i64: 1, 32>}, {pipeline_mode = #tpu.pipeline_mode<synchronous>, transform_indices = @transform_10, window_bounds = array<i64: 1, 32>}, {pipeline_mode = #tpu.pipeline_mode<synchronous>, transform_indices = @transform_11, window_bounds = array<i64: 32, 128>}, {pipeline_mode = #tpu.pipeline_mode<synchronous>, transform_indices = @transform_12, window_bounds = array<i64: 1, 128>}, {pipeline_mode = #tpu.pipeline_mode<synchronous>, transform_indices = @transform_13, window_bounds = array<i64: 8, 128>}]} {
    %c0_i32 = arith.constant 0 : i32
    %0 = arith.cmpi eq, %arg0, %c0_i32 : i32
    %1 = arith.extui %0 : i1 to i32
    %c0_i32_0 = arith.constant 0 : i32
    %2 = arith.cmpi ne, %1, %c0_i32_0 : i32
    scf.if %2 {
      %cst_29 = arith.constant 0.000000e+00 : f32
      %42 = vector.broadcast %cst_29 : f32 to vector<8x8xf32>
      %c0_30 = arith.constant 0 : index
      %c0_31 = arith.constant 0 : index
      %43 = vector.load %arg15[%c0_30, %c0_31] : memref<8x8xf32, #tpu.memory_space<vmem>>, vector<8x8xf32>
      tpu.vector_store %arg15[%c0_30, %c0_31], %42 {strides = array<i32>} : memref<8x8xf32, #tpu.memory_space<vmem>>, vector<8x8xf32>,
      %cst_32 = arith.constant 0.000000e+00 : f32
      %44 = vector.broadcast %cst_32 : f32 to vector<8x8xf32>
      %c0_33 = arith.constant 0 : index
      %c0_34 = arith.constant 0 : index
      %45 = vector.load %arg16[%c0_33, %c0_34] : memref<8x8xf32, #tpu.memory_space<vmem>>, vector<8x8xf32>
      tpu.vector_store %arg16[%c0_33, %c0_34], %44 {strides = array<i32>} : memref<8x8xf32, #tpu.memory_space<vmem>>, vector<8x8xf32>,
      %cst_35 = arith.constant 0.000000e+00 : f32
      %46 = vector.broadcast %cst_35 : f32 to vector<8x1xf32>
      %c0_36 = arith.constant 0 : index
      %c0_37 = arith.constant 0 : index
      %47 = vector.load %arg17[%c0_36, %c0_37] : memref<8x1xf32, #tpu.memory_space<vmem>>, vector<8x1xf32>
      tpu.vector_store %arg17[%c0_36, %c0_37], %46 {strides = array<i32>} : memref<8x1xf32, #tpu.memory_space<vmem>>, vector<8x1xf32>,
      %cst_38 = arith.constant 0.000000e+00 : f32
      %48 = vector.broadcast %cst_38 : f32 to vector<8x1xf32>
      %c0_39 = arith.constant 0 : index
      %c0_40 = arith.constant 0 : index
      %49 = vector.load %arg18[%c0_39, %c0_40] : memref<8x1xf32, #tpu.memory_space<vmem>>, vector<8x1xf32>
      tpu.vector_store %arg18[%c0_39, %c0_40], %48 {strides = array<i32>} : memref<8x1xf32, #tpu.memory_space<vmem>>, vector<8x1xf32>,
    } else {
    }
    %3 = tpu.iota {dimensions = array<i32: 0>} : vector<8x128xi32>
    %c0 = arith.constant 0 : index
    %c0_1 = arith.constant 0 : index
    %4 = vector.load %arg1[%c0, %c0_1] : memref<1x128xi32, #tpu.memory_space<vmem>>, vector<1x128xi32>
    %5 = vector.broadcast %4 : vector<1x128xi32> to vector<8x128xi32>
    %6 = arith.cmpi eq, %3, %5 : vector<8x128xi32>
    %7 = arith.extui %6 : vector<8x128xi1> to vector<8x128xi32>
    %8 = arith.sitofp %7 : vector<8x128xi32> to vector<8x128xf32>
    %c0_2 = arith.constant 0 : index
    %c0_3 = arith.constant 0 : index
    %9 = vector.load %arg15[%c0_2, %c0_3] : memref<8x8xf32, #tpu.memory_space<vmem>>, vector<8x8xf32>
    %c0_4 = arith.constant 0 : index
    %c0_5 = arith.constant 0 : index
    %10 = vector.load %arg2[%c0_4, %c0_5] : memref<8x128xf32, #tpu.memory_space<vmem>>, vector<8x128xf32>
    %cst = arith.constant dense<0.000000e+00> : vector<8x8xf32>
    %11 = tpu.matmul %8, %10, %cst {dimension_numbers = #tpu.dot_dimension_numbers<[1], [1], [0], [0], [0, 0, 1, 0], [], []>} : vector<8x128xf32>, vector<8x128xf32>, vector<8x8xf32> -> vector<8x8xf32>
    %12 = arith.addf %9, %11 : vector<8x8xf32>
    %c0_6 = arith.constant 0 : index
    %c0_7 = arith.constant 0 : index
    %13 = vector.load %arg15[%c0_6, %c0_7] : memref<8x8xf32, #tpu.memory_space<vmem>>, vector<8x8xf32>
    tpu.vector_store %arg15[%c0_6, %c0_7], %12 {strides = array<i32>} : memref<8x8xf32, #tpu.memory_space<vmem>>, vector<8x8xf32>,
    %c0_8 = arith.constant 0 : index
    %c0_9 = arith.constant 0 : index
    %14 = vector.load %arg17[%c0_8, %c0_9] : memref<8x1xf32, #tpu.memory_space<vmem>>, vector<8x1xf32>
    %15 = arith.extui %6 : vector<8x128xi1> to vector<8x128xi32>
    %16 = arith.sitofp %15 : vector<8x128xi32> to vector<8x128xf32>
    %cst_10 = arith.constant dense<0.000000e+00> : vector<8xf32>
    %17 = vector.multi_reduction <add>, %16, %cst_10 [1] : vector<8x128xf32> to vector<8xf32>
    %18 = vector.shape_cast %17 : vector<8xf32> to vector<8x1xf32>
    %19 = arith.addf %14, %18 : vector<8x1xf32>
    %c0_11 = arith.constant 0 : index
    %c0_12 = arith.constant 0 : index
    %20 = vector.load %arg17[%c0_11, %c0_12] : memref<8x1xf32, #tpu.memory_space<vmem>>, vector<8x1xf32>
    tpu.vector_store %arg17[%c0_11, %c0_12], %19 {strides = array<i32>} : memref<8x1xf32, #tpu.memory_space<vmem>>, vector<8x1xf32>,
    %21 = tpu.iota {dimensions = array<i32: 0>} : vector<8x128xi32>
    %c0_13 = arith.constant 0 : index
    %c0_14 = arith.constant 0 : index
    %22 = vector.load %arg3[%c0_13, %c0_14] : memref<1x128xi32, #tpu.memory_space<vmem>>, vector<1x128xi32>
    %23 = vector.broadcast %22 : vector<1x128xi32> to vector<8x128xi32>
    %24 = arith.cmpi eq, %21, %23 : vector<8x128xi32>
    %25 = arith.extui %24 : vector<8x128xi1> to vector<8x128xi32>
    %26 = arith.sitofp %25 : vector<8x128xi32> to vector<8x128xf32>
    %c0_15 = arith.constant 0 : index
    %c0_16 = arith.constant 0 : index
    %27 = vector.load %arg16[%c0_15, %c0_16] : memref<8x8xf32, #tpu.memory_space<vmem>>, vector<8x8xf32>
    %c0_17 = arith.constant 0 : index
    %c0_18 = arith.constant 0 : index
    %28 = vector.load %arg4[%c0_17, %c0_18] : memref<8x128xf32, #tpu.memory_space<vmem>>, vector<8x128xf32>
    %cst_19 = arith.constant dense<0.000000e+00> : vector<8x8xf32>
    %29 = tpu.matmul %26, %28, %cst_19 {dimension_numbers = #tpu.dot_dimension_numbers<[1], [1], [0], [0], [0, 0, 1, 0], [], []>} : vector<8x128xf32>, vector<8x128xf32>, vector<8x8xf32> -> vector<8x8xf32>
    %30 = arith.addf %27, %29 : vector<8x8xf32>
    %c0_20 = arith.constant 0 : index
    %c0_21 = arith.constant 0 : index
    %31 = vector.load %arg16[%c0_20, %c0_21] : memref<8x8xf32, #tpu.memory_space<vmem>>, vector<8x8xf32>
    tpu.vector_store %arg16[%c0_20, %c0_21], %30 {strides = array<i32>} : memref<8x8xf32, #tpu.memory_space<vmem>>, vector<8x8xf32>,
    %c0_22 = arith.constant 0 : index
    %c0_23 = arith.constant 0 : index
    %32 = vector.load %arg18[%c0_22, %c0_23] : memref<8x1xf32, #tpu.memory_space<vmem>>, vector<8x1xf32>
    %33 = arith.extui %24 : vector<8x128xi1> to vector<8x128xi32>
    %34 = arith.sitofp %33 : vector<8x128xi32> to vector<8x128xf32>
    %cst_24 = arith.constant dense<0.000000e+00> : vector<8xf32>
    %35 = vector.multi_reduction <add>, %34, %cst_24 [1] : vector<8x128xf32> to vector<8xf32>
    %36 = vector.shape_cast %35 : vector<8xf32> to vector<8x1xf32>
    %37 = arith.addf %32, %36 : vector<8x1xf32>
    %c0_25 = arith.constant 0 : index
    %c0_26 = arith.constant 0 : index
    %38 = vector.load %arg18[%c0_25, %c0_26] : memref<8x1xf32, #tpu.memory_space<vmem>>, vector<8x1xf32>
    tpu.vector_store %arg18[%c0_25, %c0_26], %37 {strides = array<i32>} : memref<8x1xf32, #tpu.memory_space<vmem>>, vector<8x1xf32>,
    %c0_i32_27 = arith.constant 0 : i32
    %39 = arith.cmpi eq, %arg0, %c0_i32_27 : i32
    %40 = arith.extui %39 : i1 to i32
    %c0_i32_28 = arith.constant 0 : i32
    %41 = arith.cmpi ne, %40, %c0_i32_28 : i32
    scf.if %41 {
      %c0_29 = arith.constant 0 : index
      %c0_30 = arith.constant 0 : index
      %42 = vector.load %arg15[%c0_29, %c0_30] : memref<8x8xf32, #tpu.memory_space<vmem>>, vector<8x8xf32>
      %c0_31 = arith.constant 0 : index
      %c0_32 = arith.constant 0 : index
      %43 = vector.load %arg17[%c0_31, %c0_32] : memref<8x1xf32, #tpu.memory_space<vmem>>, vector<8x1xf32>
      %cst_33 = arith.constant 1.000000e+00 : f32
      %44 = vector.broadcast %cst_33 : f32 to vector<8x1xf32>
      %45 = arith.maximumf %43, %44 : vector<8x1xf32>
      %46 = vector.broadcast %45 : vector<8x1xf32> to vector<8x8xf32>
      %47 = arith.divf %42, %46 : vector<8x8xf32>
      %c0_34 = arith.constant 0 : index
      %c0_35 = arith.constant 0 : index
      %48 = vector.load %arg16[%c0_34, %c0_35] : memref<8x8xf32, #tpu.memory_space<vmem>>, vector<8x8xf32>
      %c0_36 = arith.constant 0 : index
      %c0_37 = arith.constant 0 : index
      %49 = vector.load %arg18[%c0_36, %c0_37] : memref<8x1xf32, #tpu.memory_space<vmem>>, vector<8x1xf32>
      %cst_38 = arith.constant 1.000000e+00 : f32
      %50 = vector.broadcast %cst_38 : f32 to vector<8x1xf32>
      %51 = arith.maximumf %49, %50 : vector<8x1xf32>
      %52 = vector.broadcast %51 : vector<8x1xf32> to vector<8x8xf32>
      %53 = arith.divf %48, %52 : vector<8x8xf32>
      %c0_39 = arith.constant 0 : index
      %c0_40 = arith.constant 0 : index
      %54 = vector.load %arg5[%c0_39, %c0_40] : memref<8x8xf32, #tpu.memory_space<vmem>>, vector<8x8xf32>
      %c0_41 = arith.constant 0 : index
      %c0_42 = arith.constant 0 : index
      %55 = vector.load %arg6[%c0_41, %c0_42] : memref<8x32xf32, #tpu.memory_space<vmem>>, vector<8x32xf32>
      %cst_43 = arith.constant dense<0.000000e+00> : vector<8x32xf32>
      %56 = tpu.matmul %54, %55, %cst_43 {dimension_numbers = #tpu.dot_dimension_numbers<[1], [0], [0], [1], [0, 0, 1, 1], [], []>} : vector<8x8xf32>, vector<8x32xf32>, vector<8x32xf32> -> vector<8x32xf32>
      %c0_44 = arith.constant 0 : index
      %c0_45 = arith.constant 0 : index
      %57 = vector.load %arg7[%c0_44, %c0_45] : memref<8x32xf32, #tpu.memory_space<vmem>>, vector<8x32xf32>
      %cst_46 = arith.constant dense<0.000000e+00> : vector<8x32xf32>
      %58 = tpu.matmul %47, %57, %cst_46 {dimension_numbers = #tpu.dot_dimension_numbers<[1], [0], [0], [1], [0, 0, 1, 1], [], []>} : vector<8x8xf32>, vector<8x32xf32>, vector<8x32xf32> -> vector<8x32xf32>
      %59 = arith.addf %56, %58 : vector<8x32xf32>
      %c0_47 = arith.constant 0 : index
      %c0_48 = arith.constant 0 : index
      %60 = vector.load %arg8[%c0_47, %c0_48] : memref<8x32xf32, #tpu.memory_space<vmem>>, vector<8x32xf32>
      %cst_49 = arith.constant dense<0.000000e+00> : vector<8x32xf32>
      %61 = tpu.matmul %53, %60, %cst_49 {dimension_numbers = #tpu.dot_dimension_numbers<[1], [0], [0], [1], [0, 0, 1, 1], [], []>} : vector<8x8xf32>, vector<8x32xf32>, vector<8x32xf32> -> vector<8x32xf32>
      %62 = arith.addf %59, %61 : vector<8x32xf32>
      %c0_50 = arith.constant 0 : index
      %c0_51 = arith.constant 0 : index
      %63 = vector.load %arg9[%c0_50, %c0_51] : memref<1x32xf32, #tpu.memory_space<vmem>>, vector<1x32xf32>
      %64 = vector.broadcast %63 : vector<1x32xf32> to vector<8x32xf32>
      %65 = arith.addf %62, %64 : vector<8x32xf32>
      %cst_52 = arith.constant dense<0.000000e+00> : vector<8xf32>
      %66 = vector.multi_reduction <add>, %65, %cst_52 [1] : vector<8x32xf32> to vector<8xf32>
      %67 = vector.shape_cast %66 : vector<8xf32> to vector<8x1xf32>
      %cst_53 = arith.constant 3.200000e+01 : f32
      %68 = vector.broadcast %cst_53 : f32 to vector<8x1xf32>
      %69 = arith.divf %67, %68 : vector<8x1xf32>
      %70 = vector.broadcast %69 : vector<8x1xf32> to vector<8x32xf32>
      %71 = arith.subf %65, %70 : vector<8x32xf32>
      %72 = vector.broadcast %69 : vector<8x1xf32> to vector<8x32xf32>
      %73 = arith.subf %65, %72 : vector<8x32xf32>
      %74 = arith.mulf %71, %73 : vector<8x32xf32>
      %cst_54 = arith.constant dense<0.000000e+00> : vector<8xf32>
      %75 = vector.multi_reduction <add>, %74, %cst_54 [1] : vector<8x32xf32> to vector<8xf32>
      %76 = vector.shape_cast %75 : vector<8xf32> to vector<8x1xf32>
      %cst_55 = arith.constant 3.200000e+01 : f32
      %77 = vector.broadcast %cst_55 : f32 to vector<8x1xf32>
      %78 = arith.divf %76, %77 : vector<8x1xf32>
      %79 = vector.broadcast %69 : vector<8x1xf32> to vector<8x32xf32>
      %80 = arith.subf %65, %79 : vector<8x32xf32>
      %cst_56 = arith.constant 9.99999974E-6 : f32
      %81 = vector.broadcast %cst_56 : f32 to vector<8x1xf32>
      %82 = arith.addf %78, %81 : vector<8x1xf32>
      %83 = math.rsqrt %82 : vector<8x1xf32>
      %84 = vector.broadcast %83 : vector<8x1xf32> to vector<8x32xf32>
      %85 = arith.mulf %80, %84 : vector<8x32xf32>
      %c0_57 = arith.constant 0 : index
      %c0_58 = arith.constant 0 : index
      %86 = vector.load %arg10[%c0_57, %c0_58] : memref<1x32xf32, #tpu.memory_space<vmem>>, vector<1x32xf32>
      %87 = vector.broadcast %86 : vector<1x32xf32> to vector<8x32xf32>
      %88 = arith.mulf %85, %87 : vector<8x32xf32>
      %c0_59 = arith.constant 0 : index
      %c0_60 = arith.constant 0 : index
      %89 = vector.load %arg11[%c0_59, %c0_60] : memref<1x32xf32, #tpu.memory_space<vmem>>, vector<1x32xf32>
      %90 = vector.broadcast %89 : vector<1x32xf32> to vector<8x32xf32>
      %91 = arith.addf %88, %90 : vector<8x32xf32>
      %cst_61 = arith.constant 0.000000e+00 : f32
      %92 = vector.broadcast %cst_61 : f32 to vector<8x32xf32>
      %93 = arith.maximumf %91, %92 : vector<8x32xf32>
      %c0_62 = arith.constant 0 : index
      %c0_63 = arith.constant 0 : index
      %94 = vector.load %arg12[%c0_62, %c0_63] : memref<32x128xf32, #tpu.memory_space<vmem>>, vector<32x128xf32>
      %cst_64 = arith.constant dense<0.000000e+00> : vector<8x128xf32>
      %95 = tpu.matmul %93, %94, %cst_64 {dimension_numbers = #tpu.dot_dimension_numbers<[1], [0], [0], [1], [0, 0, 1, 1], [], []>} : vector<8x32xf32>, vector<32x128xf32>, vector<8x128xf32> -> vector<8x128xf32>
      %c0_65 = arith.constant 0 : index
      %c0_66 = arith.constant 0 : index
      %96 = vector.load %arg13[%c0_65, %c0_66] : memref<1x128xf32, #tpu.memory_space<vmem>>, vector<1x128xf32>
      %97 = vector.broadcast %96 : vector<1x128xf32> to vector<8x128xf32>
      %98 = arith.addf %95, %97 : vector<8x128xf32>
      %c0_67 = arith.constant 0 : index
      %c0_68 = arith.constant 0 : index
      %99 = vector.load %arg14[%c0_67, %c0_68] : memref<8x128xf32, #tpu.memory_space<vmem>>, vector<8x128xf32>
      tpu.vector_store %arg14[%c0_67, %c0_68], %98 {strides = array<i32>} : memref<8x128xf32, #tpu.memory_space<vmem>>, vector<8x128xf32>,
    } else {
    }
    return
  }
  func.func @transform_0(%arg0: i32) -> (i32, i32) {
    %c0_i32 = arith.constant 0 : i32
    %c0_i32_0 = arith.constant 0 : i32
    return %c0_i32, %arg0 : i32, i32
  }
  func.func @transform_1(%arg0: i32) -> (i32, i32) {
    %c0_i32 = arith.constant 0 : i32
    %c0_i32_0 = arith.constant 0 : i32
    return %c0_i32, %arg0 : i32, i32
  }
  func.func @transform_2(%arg0: i32) -> (i32, i32) {
    %c0_i32 = arith.constant 0 : i32
    %c0_i32_0 = arith.constant 0 : i32
    return %c0_i32, %arg0 : i32, i32
  }
  func.func @transform_3(%arg0: i32) -> (i32, i32) {
    %c0_i32 = arith.constant 0 : i32
    %c0_i32_0 = arith.constant 0 : i32
    return %c0_i32, %arg0 : i32, i32
  }
  func.func @transform_4(%arg0: i32) -> (i32, i32) {
    %c0_i32 = arith.constant 0 : i32
    %c0_i32_0 = arith.constant 0 : i32
    %c0_i32_1 = arith.constant 0 : i32
    return %c0_i32, %c0_i32_0 : i32, i32
  }
  func.func @transform_5(%arg0: i32) -> (i32, i32) {
    %c0_i32 = arith.constant 0 : i32
    %c0_i32_0 = arith.constant 0 : i32
    %c0_i32_1 = arith.constant 0 : i32
    return %c0_i32, %c0_i32_0 : i32, i32
  }
  func.func @transform_6(%arg0: i32) -> (i32, i32) {
    %c0_i32 = arith.constant 0 : i32
    %c0_i32_0 = arith.constant 0 : i32
    %c0_i32_1 = arith.constant 0 : i32
    return %c0_i32, %c0_i32_0 : i32, i32
  }
  func.func @transform_7(%arg0: i32) -> (i32, i32) {
    %c0_i32 = arith.constant 0 : i32
    %c0_i32_0 = arith.constant 0 : i32
    %c0_i32_1 = arith.constant 0 : i32
    return %c0_i32, %c0_i32_0 : i32, i32
  }
  func.func @transform_8(%arg0: i32) -> (i32, i32) {
    %c0_i32 = arith.constant 0 : i32
    %c0_i32_0 = arith.constant 0 : i32
    %c0_i32_1 = arith.constant 0 : i32
    return %c0_i32, %c0_i32_0 : i32, i32
  }
  func.func @transform_9(%arg0: i32) -> (i32, i32) {
    %c0_i32 = arith.constant 0 : i32
    %c0_i32_0 = arith.constant 0 : i32
    %c0_i32_1 = arith.constant 0 : i32
    return %c0_i32, %c0_i32_0 : i32, i32
  }
  func.func @transform_10(%arg0: i32) -> (i32, i32) {
    %c0_i32 = arith.constant 0 : i32
    %c0_i32_0 = arith.constant 0 : i32
    %c0_i32_1 = arith.constant 0 : i32
    return %c0_i32, %c0_i32_0 : i32, i32
  }
  func.func @transform_11(%arg0: i32) -> (i32, i32) {
    %c0_i32 = arith.constant 0 : i32
    %c0_i32_0 = arith.constant 0 : i32
    %c0_i32_1 = arith.constant 0 : i32
    return %c0_i32, %c0_i32_0 : i32, i32
  }
  func.func @transform_12(%arg0: i32) -> (i32, i32) {
    %c0_i32 = arith.constant 0 : i32
    %c0_i32_0 = arith.constant 0 : i32
    %c0_i32_1 = arith.constant 0 : i32
    return %c0_i32, %c0_i32_0 : i32, i32
  }
  func.func @transform_13(%arg0: i32) -> (i32, i32) {
    %c0_i32 = arith.constant 0 : i32
    %c0_i32_0 = arith.constant 0 : i32
    %c0_i32_1 = arith.constant 0 : i32
    return %c0_i32, %c0_i32_0 : i32, i32
  }
}

</mosaic_0001>

<llo_original>
// kernel: global_model_forward.1
$region0: #{global_model_forward.1}
  #allocation0 [shape = 'u32[]', space=smem, size = 0x4, offset = 0x4, fixed_abs, tag = 'smem constant byte address 0x4 - core index']
  #allocation1 [shape = 'u32[144,128]{1,0:T(1,128)}', space=vmem, size = 0x12000, scoped, tag = 'internal scratch']
  #allocation2 [shape = 'f32[8,8]{1,0:T(8,128)}', space=vmem, size = 0x1000, scoped, tag = 'scratch operand']
  #allocation3 [shape = 'f32[8,8]{1,0:T(8,128)}', space=vmem, size = 0x1000, scoped, tag = 'scratch operand']
  #allocation4 [shape = 'f32[8,1]{1,0:T(8,128)}', space=vmem, size = 0x1000, scoped, tag = 'scratch operand']
  #allocation5 [shape = 'f32[8,1]{1,0:T(8,128)}', space=vmem, size = 0x1000, scoped, tag = 'scratch operand']
  %s0 = inlined_call_operand.vmem [shape: s32[1,128], index: 0, kind: input, shape index: {}]
  %s1 = inlined_call_operand.vmem [shape: f32[8,128], index: 1, kind: input, shape index: {}]
  %s2 = inlined_call_operand.vmem [shape: s32[1,128], index: 2, kind: input, shape index: {}]
  %s3 = inlined_call_operand.vmem [shape: f32[8,128], index: 3, kind: input, shape index: {}]
  %s4 = inlined_call_operand.vmem [shape: f32[8,8], index: 4, kind: input, shape index: {}]
  %s5 = inlined_call_operand.vmem [shape: f32[8,32], index: 5, kind: input, shape index: {}]
  %s6 = inlined_call_operand.vmem [shape: f32[8,32], index: 6, kind: input, shape index: {}]
  %s7 = inlined_call_operand.vmem [shape: f32[8,32], index: 7, kind: input, shape index: {}]
  %s8 = inlined_call_operand.vmem [shape: f32[1,32], index: 8, kind: input, shape index: {}]
  %s9 = inlined_call_operand.vmem [shape: f32[1,32], index: 9, kind: input, shape index: {}]
  %s10 = inlined_call_operand.vmem [shape: f32[1,32], index: 10, kind: input, shape index: {}]
  %s11 = inlined_call_operand.vmem [shape: f32[32,128], index: 11, kind: input, shape index: {}]
  %s12 = inlined_call_operand.vmem [shape: f32[1,128], index: 12, kind: input, shape index: {}]
  %s13 = inlined_call_operand.vmem [shape: f32[8,128], index: 13, kind: output, shape index: {}]
  %s14 = sld [smem:[#allocation0]]
  $region70: #{global_model_forward.1} parent=0
    _
  %s16 = ssub.s32 1, %s14
  %s17 = scalar_select 0, %s16, %s14
  // Predicated region
  $region2: #{global_model_forward.1} parent=0 // pred_check
    _
  $region3: #{global_model_forward.1} parent=0 // pred_check_branch
    %19 = sbr.rel (0) target = $region5
  $region4: #{global_model_forward.1} parent=0 // pred_region
    _
  $region5: #{global_model_forward.1} parent=0 // pred_fallthru
    _
  // Predicated region
  $region6: #{global_model_forward.1} parent=0 // pred_check
    _
  $region7: #{global_model_forward.1} parent=0 // pred_check_branch
    %21 = sbr.rel (0) target = $region9
  $region8: #{global_model_forward.1} parent=0 // pred_region
    _
  $region9: #{global_model_forward.1} parent=0 // pred_fallthru
    _
  // Predicated region
  $region10: #{global_model_forward.1} parent=0 // pred_check
    _
  $region11: #{global_model_forward.1} parent=0 // pred_check_branch
    %23 = sbr.rel (0) target = $region13
  $region12: #{global_model_forward.1} parent=0 // pred_region
    _
  $region13: #{global_model_forward.1} parent=0 // pred_fallthru
    _
  // Predicated region
  $region14: #{global_model_forward.1} parent=0 // pred_check
    _
  $region15: #{global_model_forward.1} parent=0 // pred_check_branch
    %25 = sbr.rel (0) target = $region17
  $region16: #{global_model_forward.1} parent=0 // pred_region
    _
  $region17: #{global_model_forward.1} parent=0 // pred_fallthru
    _
  // Predicated region
  $region18: #{global_model_forward.1} parent=0 // pred_check
    _
  $region19: #{global_model_forward.1} parent=0 // pred_check_branch
    %27 = sbr.rel (0) target = $region21
  $region20: #{global_model_forward.1} parent=0 // pred_region
    _
  $region21: #{global_model_forward.1} parent=0 // pred_fallthru
    _
  // Predicated region
  $region22: #{global_model_forward.1} parent=0 // pred_check
    _
  $region23: #{global_model_forward.1} parent=0 // pred_check_branch
    %29 = sbr.rel (0) target = $region25
  $region24: #{global_model_forward.1} parent=0 // pred_region
    _
  $region25: #{global_model_forward.1} parent=0 // pred_fallthru
    _
  // Predicated region
  $region26: #{global_model_forward.1} parent=0 // pred_check
    _
  $region27: #{global_model_forward.1} parent=0 // pred_check_branch
    %31 = sbr.rel (0) target = $region29
  $region28: #{global_model_forward.1} parent=0 // pred_region
    _
  $region29: #{global_model_forward.1} parent=0 // pred_fallthru
    _
  // Predicated region
  $region30: #{global_model_forward.1} parent=0 // pred_check
    _
  $region31: #{global_model_forward.1} parent=0 // pred_check_branch
    %33 = sbr.rel (0) target = $region33
  $region32: #{global_model_forward.1} parent=0 // pred_region
    _
  $region33: #{global_model_forward.1} parent=0 // pred_fallthru
    _
  // Predicated region
  $region34: #{global_model_forward.1} parent=0 // pred_check
    _
  $region35: #{global_model_forward.1} parent=0 // pred_check_branch
    %35 = sbr.rel (0) target = $region37
  $region36: #{global_model_forward.1} parent=0 // pred_region
    _
  $region37: #{global_model_forward.1} parent=0 // pred_fallthru
    _
  // Predicated region
  $region38: #{global_model_forward.1} parent=0 // pred_check
    _
  $region39: #{global_model_forward.1} parent=0 // pred_check_branch
    %37 = sbr.rel (0) target = $region41
  $region40: #{global_model_forward.1} parent=0 // pred_region
    _
  $region41: #{global_model_forward.1} parent=0 // pred_fallthru
    _
  // Predicated region
  $region42: #{global_model_forward.1} parent=0 // pred_check
    _
  $region43: #{global_model_forward.1} parent=0 // pred_check_branch
    %39 = sbr.rel (0) target = $region45
  $region44: #{global_model_forward.1} parent=0 // pred_region
    _
  $region45: #{global_model_forward.1} parent=0 // pred_fallthru
    _
  // Predicated region
  $region46: #{global_model_forward.1} parent=0 // pred_check
    _
  $region47: #{global_model_forward.1} parent=0 // pred_check_branch
    %41 = sbr.rel (0) target = $region49
  $region48: #{global_model_forward.1} parent=0 // pred_region
    _
  $region49: #{global_model_forward.1} parent=0 // pred_fallthru
    _
  // Predicated region
  $region50: #{global_model_forward.1} parent=0 // pred_check
    _
  $region51: #{global_model_forward.1} parent=0 // pred_check_branch
    %43 = sbr.rel (0) target = $region53
  $region52: #{global_model_forward.1} parent=0 // pred_region
    _
  $region53: #{global_model_forward.1} parent=0 // pred_fallthru
    _
  %p44 = scmp.eq.s32.totalorder 0, 0
  // Predicated region
  $region54: #{global_model_forward.1} parent=0 // pred_check
    %p45 = pneg %p44
  $region55: #{global_model_forward.1} parent=0 // pred_check_branch
    %47 = sbr.rel (%p45) target = $region57
  $region56: #{global_model_forward.1} parent=0 // pred_region
    %vm48 = vcmask 64512
    %49 = vst.msk [vmem:[#allocation2] sm:$0xff] %vm48, 0.0
    %50 = vst.msk [vmem:[#allocation3] sm:$0xff] %vm48, 0.0
    %vm51 = vcmask 7168
    %52 = vst.msk [vmem:[#allocation4] sm:$0xff] %vm51, 0.0
    %53 = vst.msk [vmem:[#allocation5] sm:$0xff] %vm51, 0.0
  $region57: #{global_model_forward.1} parent=0 // pred_fallthru
    _
  %v54 = vlaneseq
  %v55 = vshrl.u32 %v54, 7
  %v56 = vld [vmem:[%s0] sm:$0x1]
  %v57 = vlaneseq
  %v58 = vshrl.u32 %v57, 7
  %v59 = vsub.s32 0, %v58
  %v60 = vrot.slane %v56, %v59
  %vm61 = vcmp.eq.s32.totalorder %v55, %v60
  %v62 = vsel %vm61, 1, 0
  %v63 = vcvt.s32.f32 %v62
  %v64 = vld [vmem:[#allocation2] sm:$0xff]
  %v65 = vld [vmem:[%s1] sm:$0xff]
  %66 = vmatprep.subr.mxu0 0.0
  %67 = vmatpush1.xpose.msra.mxu0 0.0
  %68 = vmatprep.subr.mxu0 0.0
  %69 = vmatpush1.xpose.msra.mxu0 0.0
  %70 = vmatprep.subr.mxu0 0.0
  %71 = vmatpush1.xpose.msra.mxu0 0.0
  %72 = vmatprep.subr.mxu0 0.0
  %73 = vmatpush1.xpose.msra.mxu0 0.0
  %74 = vmatprep.subr.mxu0 0.0
  %75 = vmatpush1.xpose.msra.mxu0 0.0
  %76 = vmatprep.subr.mxu0 0.0
  %77 = vmatpush1.xpose.msra.mxu0 0.0
  %78 = vmatprep.subr.mxu0 0.0
  %79 = vmatpush1.xpose.msra.mxu0 0.0
  %80 = vmatprep.subr.mxu0 0.0
  %81 = vmatpush1.xpose.msra.mxu0 0.0
  %82 = vmatprep.subr.mxu0 0.0
  %83 = vmatpush1.xpose.msra.mxu0 0.0
  %84 = vmatprep.subr.mxu0 0.0
  %85 = vmatpush1.xpose.msra.mxu0 0.0
  %86 = vmatprep.subr.mxu0 0.0
  %87 = vmatpush1.xpose.msra.mxu0 0.0
  %88 = vmatprep.subr.mxu0 0.0
  %89 = vmatpush1.xpose.msra.mxu0 0.0
  %90 = vmatprep.subr.mxu0 0.0
  %91 = vmatpush1.xpose.msra.mxu0 0.0
  %92 = vmatprep.subr.mxu0 0.0
  %93 = vmatpush1.xpose.msra.mxu0 0.0
  %94 = vmatprep.subr.mxu0 0.0
  %95 = vmatpush1.xpose.msra.mxu0 0.0
  %96 = vmatprep.subr.mxu0 0.0
  %97 = vmatpush1.xpose.msra.mxu0 %v65
  %98 = vmatprep.subr.mxu0 0.0
  %99 = vmatpush2.xpose.msra.mxu0 0.0
  %100 = vmatprep.subr.mxu0 0.0
  %101 = vmatpush2.xpose.msra.mxu0 0.0
  %102 = vmatprep.subr.mxu0 0.0
  %103 = vmatpush2.xpose.msra.mxu0 0.0
  %104 = vmatprep.subr.mxu0 0.0
  %105 = vmatpush2.xpose.msra.mxu0 0.0
  %106 = vmatprep.subr.mxu0 0.0
  %107 = vmatpush2.xpose.msra.mxu0 0.0
  %108 = vmatprep.subr.mxu0 0.0
  %109 = vmatpush2.xpose.msra.mxu0 0.0
  %110 = vmatprep.subr.mxu0 0.0
  %111 = vmatpush2.xpose.msra.mxu0 0.0
  %112 = vmatprep.subr.mxu0 0.0
  %113 = vmatpush2.xpose.msra.mxu0 0.0
  %114 = vmatprep.subr.mxu0 0.0
  %115 = vmatpush2.xpose.msra.mxu0 0.0
  %116 = vmatprep.subr.mxu0 0.0
  %117 = vmatpush2.xpose.msra.mxu0 0.0
  %118 = vmatprep.subr.mxu0 0.0
  %119 = vmatpush2.xpose.msra.mxu0 0.0
  %120 = vmatprep.subr.mxu0 0.0
  %121 = vmatpush2.xpose.msra.mxu0 0.0
  %122 = vmatprep.subr.mxu0 0.0
  %123 = vmatpush2.xpose.msra.mxu0 0.0
  %124 = vmatprep.subr.mxu0 0.0
  %125 = vmatpush2.xpose.msra.mxu0 0.0
  %126 = vmatprep.subr.mxu0 0.0
  %127 = vmatpush2.xpose.msra.mxu0 0.0
  %128 = vmatprep.subr.mxu0 0.0
  %129 = vmatpush2.xpose.msra.mxu0 0.0
  %130 = vmatprep.mubr.f32.mxu0 0.0
  %131 = vmatmul.mubr.f32.gmra.mxu0 %v63
  %v132 = vpop.f32.mrf.mxu0
  %v133 = vadd.f32 0.0, %v132
  %v134 = vpop.f32.mrf.mxu0
  %135 = vdwg.mxu0
  %v136 = vadd.f32 %v64, %v133
  %vm137 = vcmask 64512
  %138 = vst.msk [vmem:[#allocation2] sm:$0xff] %vm137, %v136
  %v139 = vld [vmem:[#allocation4] sm:$0xff]
  %140 = vadd.xlane.f32.xlu0 %v63
  %v141 = vpop.xlane.xlu0 %140
  %v142 = vadd.f32 %v139, %v141
  %vm143 = vcmask 7168
  %144 = vst.msk [vmem:[#allocation4] sm:$0xff] %vm143, %v142
  %v145 = vld [vmem:[%s2] sm:$0x1]
  %v146 = vlaneseq
  %v147 = vshrl.u32 %v146, 7
  %v148 = vsub.s32 0, %v147
  %v149 = vrot.slane %v145, %v148
  %vm150 = vcmp.eq.s32.totalorder %v55, %v149
  %v151 = vsel %vm150, 1, 0
  %v152 = vcvt.s32.f32 %v151
  %v153 = vld [vmem:[#allocation3] sm:$0xff]
  %v154 = vld [vmem:[%s3] sm:$0xff]
  %155 = vmatprep.subr.mxu0 0.0
  %156 = vmatpush1.xpose.msra.mxu0 0.0
  %157 = vmatprep.subr.mxu0 0.0
  %158 = vmatpush1.xpose.msra.mxu0 0.0
  %159 = vmatprep.subr.mxu0 0.0
  %160 = vmatpush1.xpose.msra.mxu0 0.0
  %161 = vmatprep.subr.mxu0 0.0
  %162 = vmatpush1.xpose.msra.mxu0 0.0
  %163 = vmatprep.subr.mxu0 0.0
  %164 = vmatpush1.xpose.msra.mxu0 0.0
  %165 = vmatprep.subr.mxu0 0.0
  %166 = vmatpush1.xpose.msra.mxu0 0.0
  %167 = vmatprep.subr.mxu0 0.0
  %168 = vmatpush1.xpose.msra.mxu0 0.0
  %169 = vmatprep.subr.mxu0 0.0
  %170 = vmatpush1.xpose.msra.mxu0 0.0
  %171 = vmatprep.subr.mxu0 0.0
  %172 = vmatpush1.xpose.msra.mxu0 0.0
  %173 = vmatprep.subr.mxu0 0.0
  %174 = vmatpush1.xpose.msra.mxu0 0.0
  %175 = vmatprep.subr.mxu0 0.0
  %176 = vmatpush1.xpose.msra.mxu0 0.0
  %177 = vmatprep.subr.mxu0 0.0
  %178 = vmatpush1.xpose.msra.mxu0 0.0
  %179 = vmatprep.subr.mxu0 0.0
  %180 = vmatpush1.xpose.msra.mxu0 0.0
  %181 = vmatprep.subr.mxu0 0.0
  %182 = vmatpush1.xpose.msra.mxu0 0.0
  %183 = vmatprep.subr.mxu0 0.0
  %184 = vmatpush1.xpose.msra.mxu0 0.0
  %185 = vmatprep.subr.mxu0 0.0
  %186 = vmatpush1.xpose.msra.mxu0 %v154
  %187 = vmatprep.subr.mxu0 0.0
  %188 = vmatpush2.xpose.msra.mxu0 0.0
  %189 = vmatprep.subr.mxu0 0.0
  %190 = vmatpush2.xpose.msra.mxu0 0.0
  %191 = vmatprep.subr.mxu0 0.0
  %192 = vmatpush2.xpose.msra.mxu0 0.0
  %193 = vmatprep.subr.mxu0 0.0
  %194 = vmatpush2.xpose.msra.mxu0 0.0
  %195 = vmatprep.subr.mxu0 0.0
  %196 = vmatpush2.xpose.msra.mxu0 0.0
  %197 = vmatprep.subr.mxu0 0.0
  %198 = vmatpush2.xpose.msra.mxu0 0.0
  %199 = vmatprep.subr.mxu0 0.0
  %200 = vmatpush2.xpose.msra.mxu0 0.0
  %201 = vmatprep.subr.mxu0 0.0
  %202 = vmatpush2.xpose.msra.mxu0 0.0
  %203 = vmatprep.subr.mxu0 0.0
  %204 = vmatpush2.xpose.msra.mxu0 0.0
  %205 = vmatprep.subr.mxu0 0.0
  %206 = vmatpush2.xpose.msra.mxu0 0.0
  %207 = vmatprep.subr.mxu0 0.0
  %208 = vmatpush2.xpose.msra.mxu0 0.0
  %209 = vmatprep.subr.mxu0 0.0
  %210 = vmatpush2.xpose.msra.mxu0 0.0
  %211 = vmatprep.subr.mxu0 0.0
  %212 = vmatpush2.xpose.msra.mxu0 0.0
  %213 = vmatprep.subr.mxu0 0.0
  %214 = vmatpush2.xpose.msra.mxu0 0.0
  %215 = vmatprep.subr.mxu0 0.0
  %216 = vmatpush2.xpose.msra.mxu0 0.0
  %217 = vmatprep.subr.mxu0 0.0
  %218 = vmatpush2.xpose.msra.mxu0 0.0
  %219 = vmatprep.mubr.f32.mxu0 0.0
  %220 = vmatmul.mubr.f32.gmra.mxu0 %v152
  %v221 = vpop.f32.mrf.mxu0
  %v222 = vadd.f32 0.0, %v221
  %v223 = vpop.f32.mrf.mxu0
  %224 = vdwg.mxu0
  %v225 = vadd.f32 %v153, %v222
  %226 = vst.msk [vmem:[#allocation3] sm:$0xff] %vm137, %v225
  %v227 = vld [vmem:[#allocation5] sm:$0xff]
  %228 = vadd.xlane.f32.xlu0 %v152
  %v229 = vpop.xlane.xlu0 %228
  %v230 = vadd.f32 %v227, %v229
  %231 = vst.msk [vmem:[#allocation5] sm:$0xff] %vm143, %v230
  // Predicated region
  $region58: #{global_model_forward.1} parent=0 // pred_check
    %p232 = pneg %p44
  $region59: #{global_model_forward.1} parent=0 // pred_check_branch
    %234 = sbr.rel (%p232) target = $region61
  $region60: #{global_model_forward.1} parent=0 // pred_region
    %v235 = vld [vmem:[#allocation2] sm:$0xff]
    %v236 = vld [vmem:[#allocation4] sm:$0xff]
    %v237 = vmax.f32 %v236, 1.0
    %239 = vset.pattern.permute.xlu0 0
    %240 = vperm.xlu0 %239, %v237
    %v241 = vpop.permute.xlu0 %240
    %v243 = vrcp.pop %v241
    %v244 = vmul.f32 %v235, %v243
    %v245 = vld [vmem:[#allocation3] sm:$0xff]
    %v246 = vld [vmem:[#allocation5] sm:$0xff]
    %v247 = vmax.f32 %v246, 1.0
    %249 = vset.pattern.permute.xlu0 0
    %250 = vperm.xlu0 %249, %v247
    %v251 = vpop.permute.xlu0 %250
    %v253 = vrcp.pop %v251
    %v254 = vmul.f32 %v245, %v253
    %v255 = vld [vmem:[%s4] sm:$0xff]
    %v256 = vld [vmem:[%s5] sm:$0xff]
    %v257 = vld [vmem:[%s6] sm:$0xff]
    %v259 = vsel %vm137, %v244, 0
    %261 = vmatprep.subr.mxu0 0.0
    %262 = vmatpush1.msra.mxu0 0.0
    %263 = vmatprep.subr.mxu0 0.0
    %264 = vmatpush1.msra.mxu0 0.0
    %265 = vmatprep.subr.mxu0 0.0
    %266 = vmatpush1.msra.mxu0 0.0
    %267 = vmatprep.subr.mxu0 0.0
    %268 = vmatpush1.msra.mxu0 0.0
    %269 = vmatprep.subr.mxu0 0.0
    %270 = vmatpush1.msra.mxu0 0.0
    %271 = vmatprep.subr.mxu0 0.0
    %272 = vmatpush1.msra.mxu0 0.0
    %273 = vmatprep.subr.mxu0 0.0
    %274 = vmatpush1.msra.mxu0 0.0
    %275 = vmatprep.subr.mxu0 0.0
    %276 = vmatpush1.msra.mxu0 0.0
    %277 = vmatprep.subr.mxu0 0.0
    %278 = vmatpush1.msra.mxu0 0.0
    %279 = vmatprep.subr.mxu0 0.0
    %280 = vmatpush1.msra.mxu0 0.0
    %281 = vmatprep.subr.mxu0 0.0
    %282 = vmatpush1.msra.mxu0 0.0
    %283 = vmatprep.subr.mxu0 0.0
    %284 = vmatpush1.msra.mxu0 0.0
    %285 = vmatprep.subr.mxu0 0.0
    %286 = vmatpush1.msra.mxu0 0.0
    %287 = vmatprep.subr.mxu0 0.0
    %288 = vmatpush1.msra.mxu0 0.0
    %289 = vmatprep.subr.mxu0 0.0
    %290 = vmatpush1.msra.mxu0 0.0
    %291 = vmatprep.subr.mxu0 0.0
    %292 = vmatpush1.msra.mxu0 %v257
    %293 = vmatprep.subr.mxu0 0.0
    %294 = vmatpush2.msra.mxu0 0.0
    %295 = vmatprep.subr.mxu0 0.0
    %296 = vmatpush2.msra.mxu0 0.0
    %297 = vmatprep.subr.mxu0 0.0
    %298 = vmatpush2.msra.mxu0 0.0
    %299 = vmatprep.subr.mxu0 0.0
    %300 = vmatpush2.msra.mxu0 0.0
    %301 = vmatprep.subr.mxu0 0.0
    %302 = vmatpush2.msra.mxu0 0.0
    %303 = vmatprep.subr.mxu0 0.0
    %304 = vmatpush2.msra.mxu0 0.0
    %305 = vmatprep.subr.mxu0 0.0
    %306 = vmatpush2.msra.mxu0 0.0
    %307 = vmatprep.subr.mxu0 0.0
    %308 = vmatpush2.msra.mxu0 0.0
    %309 = vmatprep.subr.mxu0 0.0
    %310 = vmatpush2.msra.mxu0 0.0
    %311 = vmatprep.subr.mxu0 0.0
    %312 = vmatpush2.msra.mxu0 0.0
    %313 = vmatprep.subr.mxu0 0.0
    %314 = vmatpush2.msra.mxu0 0.0
    %315 = vmatprep.subr.mxu0 0.0
    %316 = vmatpush2.msra.mxu0 0.0
    %317 = vmatprep.subr.mxu0 0.0
    %318 = vmatpush2.msra.mxu0 0.0
    %319 = vmatprep.subr.mxu0 0.0
    %320 = vmatpush2.msra.mxu0 0.0
    %321 = vmatprep.subr.mxu0 0.0
    %322 = vmatpush2.msra.mxu0 0.0
    %323 = vmatprep.subr.mxu0 0.0
    %324 = vmatpush2.msra.mxu0 0.0
    %325 = vmatprep.mubr.f32.mxu0 0.0
    %326 = vmatmul.mubr.f32.gmra.mxu0 %v259
    %v327 = vpop.f32.mrf.mxu0
    %v328 = vadd.f32 0.0, %v327
    %v329 = vpop.f32.mrf.mxu0
    %330 = vdwg.mxu0
    %v332 = vsel %vm137, %v255, 0
    %334 = vmatprep.subr.mxu0 0.0
    %335 = vmatpush1.msra.mxu0 0.0
    %336 = vmatprep.subr.mxu0 0.0
    %337 = vmatpush1.msra.mxu0 0.0
    %338 = vmatprep.subr.mxu0 0.0
    %339 = vmatpush1.msra.mxu0 0.0
    %340 = vmatprep.subr.mxu0 0.0
    %341 = vmatpush1.msra.mxu0 0.0
    %342 = vmatprep.subr.mxu0 0.0
    %343 = vmatpush1.msra.mxu0 0.0
    %344 = vmatprep.subr.mxu0 0.0
    %345 = vmatpush1.msra.mxu0 0.0
    %346 = vmatprep.subr.mxu0 0.0
    %347 = vmatpush1.msra.mxu0 0.0
    %348 = vmatprep.subr.mxu0 0.0
    %349 = vmatpush1.msra.mxu0 0.0
    %350 = vmatprep.subr.mxu0 0.0
    %351 = vmatpush1.msra.mxu0 0.0
    %352 = vmatprep.subr.mxu0 0.0
    %353 = vmatpush1.msra.mxu0 0.0
    %354 = vmatprep.subr.mxu0 0.0
    %355 = vmatpush1.msra.mxu0 0.0
    %356 = vmatprep.subr.mxu0 0.0
    %357 = vmatpush1.msra.mxu0 0.0
    %358 = vmatprep.subr.mxu0 0.0
    %359 = vmatpush1.msra.mxu0 0.0
    %360 = vmatprep.subr.mxu0 0.0
    %361 = vmatpush1.msra.mxu0 0.0
    %362 = vmatprep.subr.mxu0 0.0
    %363 = vmatpush1.msra.mxu0 0.0
    %364 = vmatprep.subr.mxu0 0.0
    %365 = vmatpush1.msra.mxu0 %v256
    %366 = vmatprep.subr.mxu0 0.0
    %367 = vmatpush2.msra.mxu0 0.0
    %368 = vmatprep.subr.mxu0 0.0
    %369 = vmatpush2.msra.mxu0 0.0
    %370 = vmatprep.subr.mxu0 0.0
    %371 = vmatpush2.msra.mxu0 0.0
    %372 = vmatprep.subr.mxu0 0.0
    %373 = vmatpush2.msra.mxu0 0.0
    %374 = vmatprep.subr.mxu0 0.0
    %375 = vmatpush2.msra.mxu0 0.0
    %376 = vmatprep.subr.mxu0 0.0
    %377 = vmatpush2.msra.mxu0 0.0
    %378 = vmatprep.subr.mxu0 0.0
    %379 = vmatpush2.msra.mxu0 0.0
    %380 = vmatprep.subr.mxu0 0.0
    %381 = vmatpush2.msra.mxu0 0.0
    %382 = vmatprep.subr.mxu0 0.0
    %383 = vmatpush2.msra.mxu0 0.0
    %384 = vmatprep.subr.mxu0 0.0
    %385 = vmatpush2.msra.mxu0 0.0
    %386 = vmatprep.subr.mxu0 0.0
    %387 = vmatpush2.msra.mxu0 0.0
    %388 = vmatprep.subr.mxu0 0.0
    %389 = vmatpush2.msra.mxu0 0.0
    %390 = vmatprep.subr.mxu0 0.0
    %391 = vmatpush2.msra.mxu0 0.0
    %392 = vmatprep.subr.mxu0 0.0
    %393 = vmatpush2.msra.mxu0 0.0
    %394 = vmatprep.subr.mxu0 0.0
    %395 = vmatpush2.msra.mxu0 0.0
    %396 = vmatprep.subr.mxu0 0.0
    %397 = vmatpush2.msra.mxu0 0.0
    %398 = vmatprep.mubr.f32.mxu0 0.0
    %399 = vmatmul.mubr.f32.gmra.mxu0 %v332
    %v400 = vpop.f32.mrf.mxu0
    %v401 = vadd.f32 %v328, %v400
    %v402 = vpop.f32.mrf.mxu0
    %403 = vdwg.mxu0
    %v404 = vld [vmem:[%s7] sm:$0xff]
    %v406 = vsel %vm137, %v254, 0
    %408 = vmatprep.subr.mxu0 0.0
    %409 = vmatpush1.msra.mxu0 0.0
    %410 = vmatprep.subr.mxu0 0.0
    %411 = vmatpush1.msra.mxu0 0.0
    %412 = vmatprep.subr.mxu0 0.0
    %413 = vmatpush1.msra.mxu0 0.0
    %414 = vmatprep.subr.mxu0 0.0
    %415 = vmatpush1.msra.mxu0 0.0
    %416 = vmatprep.subr.mxu0 0.0
    %417 = vmatpush1.msra.mxu0 0.0
    %418 = vmatprep.subr.mxu0 0.0
    %419 = vmatpush1.msra.mxu0 0.0
    %420 = vmatprep.subr.mxu0 0.0
    %421 = vmatpush1.msra.mxu0 0.0
    %422 = vmatprep.subr.mxu0 0.0
    %423 = vmatpush1.msra.mxu0 0.0
    %424 = vmatprep.subr.mxu0 0.0
    %425 = vmatpush1.msra.mxu0 0.0
    %426 = vmatprep.subr.mxu0 0.0
    %427 = vmatpush1.msra.mxu0 0.0
    %428 = vmatprep.subr.mxu0 0.0
    %429 = vmatpush1.msra.mxu0 0.0
    %430 = vmatprep.subr.mxu0 0.0
    %431 = vmatpush1.msra.mxu0 0.0
    %432 = vmatprep.subr.mxu0 0.0
    %433 = vmatpush1.msra.mxu0 0.0
    %434 = vmatprep.subr.mxu0 0.0
    %435 = vmatpush1.msra.mxu0 0.0
    %436 = vmatprep.subr.mxu0 0.0
    %437 = vmatpush1.msra.mxu0 0.0
    %438 = vmatprep.subr.mxu0 0.0
    %439 = vmatpush1.msra.mxu0 %v404
    %440 = vmatprep.subr.mxu0 0.0
    %441 = vmatpush2.msra.mxu0 0.0
    %442 = vmatprep.subr.mxu0 0.0
    %443 = vmatpush2.msra.mxu0 0.0
    %444 = vmatprep.subr.mxu0 0.0
    %445 = vmatpush2.msra.mxu0 0.0
    %446 = vmatprep.subr.mxu0 0.0
    %447 = vmatpush2.msra.mxu0 0.0
    %448 = vmatprep.subr.mxu0 0.0
    %449 = vmatpush2.msra.mxu0 0.0
    %450 = vmatprep.subr.mxu0 0.0
    %451 = vmatpush2.msra.mxu0 0.0
    %452 = vmatprep.subr.mxu0 0.0
    %453 = vmatpush2.msra.mxu0 0.0
    %454 = vmatprep.subr.mxu0 0.0
    %455 = vmatpush2.msra.mxu0 0.0
    %456 = vmatprep.subr.mxu0 0.0
    %457 = vmatpush2.msra.mxu0 0.0
    %458 = vmatprep.subr.mxu0 0.0
    %459 = vmatpush2.msra.mxu0 0.0
    %460 = vmatprep.subr.mxu0 0.0
    %461 = vmatpush2.msra.mxu0 0.0
    %462 = vmatprep.subr.mxu0 0.0
    %463 = vmatpush2.msra.mxu0 0.0
    %464 = vmatprep.subr.mxu0 0.0
    %465 = vmatpush2.msra.mxu0 0.0
    %466 = vmatprep.subr.mxu0 0.0
    %467 = vmatpush2.msra.mxu0 0.0
    %468 = vmatprep.subr.mxu0 0.0
    %469 = vmatpush2.msra.mxu0 0.0
    %470 = vmatprep.subr.mxu0 0.0
    %471 = vmatpush2.msra.mxu0 0.0
    %472 = vmatprep.mubr.f32.mxu0 0.0
    %473 = vmatmul.mubr.f32.gmra.mxu0 %v406
    %v474 = vpop.f32.mrf.mxu0
    %v475 = vadd.f32 0.0, %v474
    %v476 = vpop.f32.mrf.mxu0
    %477 = vdwg.mxu0
    %v478 = vadd.f32 %v401, %v475
    %v479 = vld [vmem:[%s8] sm:$0x1]
    %v481 = vlaneseq
    %v482 = vshrl.u32 %v481, 7
    %v483 = vsub.s32 0, %v482
    %v484 = vrot.slane %v479, %v483
    %v486 = vadd.f32 %v478, %v484
    %vm487 = vcmask 261120
    %v488 = vsel %vm487, %v486, 0.0
    %489 = vadd.xlane.f32.xlu0 %v488
    %v490 = vpop.xlane.xlu0 %489
    %v491 = vrcp.pop 32.0
    %v492 = vmul.f32 %v490, %v491
    %v493 = vsub.f32 %v486, %v492
    %v494 = vmul.f32 %v493, %v493
    %v495 = vsel %vm487, %v494, 0.0
    %496 = vadd.xlane.f32.xlu0 %v495
    %v497 = vpop.xlane.xlu0 %496
    %v498 = vmul.f32 %v497, %v491
    %v499 = vadd.f32 %v498, 1e-05
    %v500 = vrsqrt.pop %v499
    %v501 = vmul.f32 %v493, %v500
    %v502 = vld [vmem:[%s9] sm:$0x1]
    %v504 = vlaneseq
    %v505 = vshrl.u32 %v504, 7
    %v506 = vsub.s32 0, %v505
    %v507 = vrot.slane %v502, %v506
    %v509 = vmul.f32 %v501, %v507
    %v510 = vld [vmem:[%s10] sm:$0x1]
    %v512 = vlaneseq
    %v513 = vshrl.u32 %v512, 7
    %v514 = vsub.s32 0, %v513
    %v515 = vrot.slane %v510, %v514
    %v517 = vadd.f32 %v509, %v515
    %v518 = vmax.f32 %v517, 0.0
    %v519 = vld [vmem:[%s11] sm:$0xff]
    %v520 = vld [vmem:[%s11 + $0x8] sm:$0xff]
    %v521 = vld [vmem:[%s11 + $0x10] sm:$0xff]
    %v522 = vld [vmem:[%s11 + $0x18] sm:$0xff]
    %v523 = vld [vmem:[%s12] sm:$0x1]
    %v525 = vlaneseq
    %v526 = vshrl.u32 %v525, 7
    %v527 = vsub.s32 0, %v526
    %v528 = vrot.slane %v523, %v527
    %v531 = vsel %vm487, %v518, 0
    %533 = vmatprep.subr.mxu0 0.0
    %534 = vmatpush1.msra.mxu0 0.0
    %535 = vmatprep.subr.mxu0 0.0
    %536 = vmatpush1.msra.mxu0 0.0
    %537 = vmatprep.subr.mxu0 0.0
    %538 = vmatpush1.msra.mxu0 0.0
    %539 = vmatprep.subr.mxu0 0.0
    %540 = vmatpush1.msra.mxu0 0.0
    %541 = vmatprep.subr.mxu0 0.0
    %542 = vmatpush1.msra.mxu0 0.0
    %543 = vmatprep.subr.mxu0 0.0
    %544 = vmatpush1.msra.mxu0 0.0
    %545 = vmatprep.subr.mxu0 0.0
    %546 = vmatpush1.msra.mxu0 0.0
    %547 = vmatprep.subr.mxu0 0.0
    %548 = vmatpush1.msra.mxu0 0.0
    %549 = vmatprep.subr.mxu0 0.0
    %550 = vmatpush1.msra.mxu0 0.0
    %551 = vmatprep.subr.mxu0 0.0
    %552 = vmatpush1.msra.mxu0 0.0
    %553 = vmatprep.subr.mxu0 0.0
    %554 = vmatpush1.msra.mxu0 0.0
    %555 = vmatprep.subr.mxu0 0.0
    %556 = vmatpush1.msra.mxu0 0.0
    %557 = vmatprep.subr.mxu0 0.0
    %558 = vmatpush1.msra.mxu0 %v522
    %559 = vmatprep.subr.mxu0 0.0
    %560 = vmatpush1.msra.mxu0 %v521
    %561 = vmatprep.subr.mxu0 0.0
    %562 = vmatpush1.msra.mxu0 %v520
    %563 = vmatprep.subr.mxu0 0.0
    %564 = vmatpush1.msra.mxu0 %v519
    %565 = vmatprep.subr.mxu0 0.0
    %566 = vmatpush2.msra.mxu0 0.0
    %567 = vmatprep.subr.mxu0 0.0
    %568 = vmatpush2.msra.mxu0 0.0
    %569 = vmatprep.subr.mxu0 0.0
    %570 = vmatpush2.msra.mxu0 0.0
    %571 = vmatprep.subr.mxu0 0.0
    %572 = vmatpush2.msra.mxu0 0.0
    %573 = vmatprep.subr.mxu0 0.0
    %574 = vmatpush2.msra.mxu0 0.0
    %575 = vmatprep.subr.mxu0 0.0
    %576 = vmatpush2.msra.mxu0 0.0
    %577 = vmatprep.subr.mxu0 0.0
    %578 = vmatpush2.msra.mxu0 0.0
    %579 = vmatprep.subr.mxu0 0.0
    %580 = vmatpush2.msra.mxu0 0.0
    %581 = vmatprep.subr.mxu0 0.0
    %582 = vmatpush2.msra.mxu0 0.0
    %583 = vmatprep.subr.mxu0 0.0
    %584 = vmatpush2.msra.mxu0 0.0
    %585 = vmatprep.subr.mxu0 0.0
    %586 = vmatpush2.msra.mxu0 0.0
    %587 = vmatprep.subr.mxu0 0.0
    %588 = vmatpush2.msra.mxu0 0.0
    %589 = vmatprep.subr.mxu0 0.0
    %590 = vmatpush2.msra.mxu0 0.0
    %591 = vmatprep.subr.mxu0 0.0
    %592 = vmatpush2.msra.mxu0 0.0
    %593 = vmatprep.subr.mxu0 0.0
    %594 = vmatpush2.msra.mxu0 0.0
    %595 = vmatprep.subr.mxu0 0.0
    %596 = vmatpush2.msra.mxu0 0.0
    %597 = vmatprep.mubr.f32.mxu0 0.0
    %598 = vmatmul.mubr.f32.gmra.mxu0 %v531
    %v599 = vpop.f32.mrf.mxu0
    %v600 = vadd.f32 %v528, %v599
    %v601 = vpop.f32.mrf.mxu0
    %602 = vdwg.mxu0
    %603 = vst [vmem:[%s13] sm:$0xff] %v600
  $region61: #{global_model_forward.1} parent=0 // pred_fallthru
    _
  // Predicated region
  $region62: #{global_model_forward.1} parent=0 // pred_check
    _
  $region63: #{global_model_forward.1} parent=0 // pred_check_branch
    %605 = sbr.rel (0) target = $region65
  $region64: #{global_model_forward.1} parent=0 // pred_region
    _
  $region65: #{global_model_forward.1} parent=0 // pred_fallthru
    _
  // Predicated region
  $region66: #{global_model_forward.1} parent=0 // pred_check
    _
  $region67: #{global_model_forward.1} parent=0 // pred_check_branch
    %607 = sbr.rel (0) target = $region69
  $region68: #{global_model_forward.1} parent=0 // pred_region
    _
  $region69: #{global_model_forward.1} parent=0 // pred_fallthru
    _

</llo_original>
